<compile_context>
chip_gen: v7x
topology: tpu7x:2x2x1
jax: 0.10.0
libtpu: 0.0.40
codegen_flags: <defaults>
</compile_context>

<pallas_src>
import jax
import jax.numpy as jnp
from jax.experimental import pallas as pl
from jax.experimental.pallas import tpu as pltpu

BN_EPS = 1e-5


def _round_up(x, m):
    return (x + m - 1) // m * m


def _pad2(a, rows, cols, dtype=None):
    a = jnp.pad(a, ((0, rows - a.shape[0]), (0, cols - a.shape[1])))
    return a if dtype is None else a.astype(dtype)


def _vmem_capacity_bytes():
    """Physical per-TC VMEM; conservative 64 MiB (v7x) fallback if unknown."""
    try:
        cap = getattr(pltpu.get_tpu_info(), "vmem_capacity_bytes", None)
        if cap:
            return int(cap)
    except Exception:
        pass
    return 64 << 20


def _fc1_stats_kernel(x_ref, w1_ref, h_ref, stats_ref):
    # fc1 on the MXU: bf16 operands, f32 accumulation.  fc1's bias is omitted
    # because it cancels exactly in the BatchNorm centering.
    h = jnp.dot(x_ref[...], w1_ref[...], preferred_element_type=jnp.float32)
    h_ref[...] = h.astype(h_ref.dtype)          # bf16 cache for pass 2
    s = jnp.sum(h, axis=0, keepdims=True)
    ss = jnp.sum(h * h, axis=0, keepdims=True)
    # One lane-dense (8, Hp) store per tile; rows 2..7 are zero filler.
    # TODO(synk): E[h^2]-E[h]^2 in f32 can cancel when |mean| >> std; switch to
    # a mean-shifted / Welford accumulation if such inputs show up.
    z = jnp.zeros((6, h.shape[1]), jnp.float32)
    stats_ref[0] = jnp.concatenate([s, ss, z], axis=0)


def _bn_relu_fc2_kernel(h_ref, scale_ref, shift_ref, w2_ref, b2_ref, o_ref):
    a = jnp.maximum(h_ref[...].astype(jnp.float32) * scale_ref[...]
                    + shift_ref[...], 0.0)
    o_ref[...] = (jnp.dot(a.astype(jnp.bfloat16), w2_ref[...],
                          preferred_element_type=jnp.float32)
                  + b2_ref[...]).astype(o_ref.dtype)


def predictor_forward(x, w1, b1, gamma, beta, w2, b2, *, block_b=None,
                      out_dtype=jnp.float32):
    """Predictor forward with training-mode (batch-stats) BatchNorm.

    x: (B, In); w1: (In, H); b1/gamma/beta: (1, H); w2: (H, Out); b2: (1, Out).
    b1 is accepted for parameter parity with nn.Linear but is not used: it
    cancels exactly in the BatchNorm centering, so the output is unchanged.
    Set out_dtype=jnp.bfloat16 to halve output writeback if the consumer
    tolerates bf16 (default f32 matches the PyTorch module).
    """
    del b1  # algebraically redundant (cancels in BN centering)
    B, In = x.shape
    H = w1.shape[1]
    Out = w2.shape[1]

    Ip = _round_up(In, 128)
    Hp = _round_up(H, 128)
    Op = _round_up(Out, 128)
    out_bytes = jnp.dtype(out_dtype).itemsize

    # Generation-aware VMEM cap and default batch tile.
    vmem_phys = _vmem_capacity_bytes()
    if vmem_phys >= (96 << 20):            # v5e / v6e: 128 MiB per TC
        vmem_cap = (vmem_phys * 3) // 4    # ~96 MiB
        default_block_b = 512
    else:                                  # v7x: 64 MiB per TC
        vmem_cap = (vmem_phys * 3) // 5    # ~38 MiB
        default_block_b = 256
    if block_b is None:
        block_b = default_block_b

    # Batch tile: multiple of 16 (bf16 packs 16 sublanes/vreg); defaults are
    # multiples of 256 (full MXU M-dim on v6e/v7x).
    TB = _round_up(min(int(block_b), B), 16)

    def _footprints(tb):
        # pass 1: 2x-buffered x tile + resident w1 + 2x-buffered h/stats out
        est1 = (2 * tb * Ip * 2 + Ip * Hp * 2 + 2 * tb * Hp * 2
                + 2 * 8 * Hp * 4)
        # pass 2: 2x-buffered h tile + resident w2 + scale/shift/b2 + out
        est2 = (2 * tb * Hp * 2 + Hp * Op * 2 + (2 * Hp + Op) * 4
                + 2 * tb * Op * out_bytes)
        return est1, est2

    # Shrink TB (instead of silently clamping the VMEM limit) until the
    # double-buffered footprint fits the generation's budget with headroom.
    while TB > 16 and max(_footprints(TB)) * 5 // 4 > vmem_cap:
        TB = max(16, _round_up(TB // 2, 16))
    # TODO(synk): add a K-tile grid axis over Ip/Hp (accumulate into a VMEM
    # scratch) once resident w1/w2 alone approach vmem_cap (e.g. 4096-dim MLPs).
    est1, est2 = _footprints(TB)

    Bp = _round_up(B, TB)
    n_bt = Bp // TB

    # Lane-dense, zero-padded bf16 matmul operands; BN params stay f32.
    x_p = _pad2(x, Bp, Ip, jnp.bfloat16)
    w1_p = _pad2(w1, Ip, Hp, jnp.bfloat16)
    w2_p = _pad2(w2, Hp, Op, jnp.bfloat16)
    gamma_p = _pad2(gamma.astype(jnp.float32), 1, Hp)
    beta_p = _pad2(beta.astype(jnp.float32), 1, Hp)
    b2_p = _pad2(b2.astype(jnp.float32), 1, Op)

    def _vlimit(est):
        return int(min(max(est * 5 // 4, 16 << 20), vmem_cap))

    # Pass 1: fc1 + per-tile BatchNorm partial statistics.  Fully parallel over
    # batch tiles (megacore-sharded on v7x).
    h_p, stats_p = pl.pallas_call(
        _fc1_stats_kernel,
        out_shape=(jax.ShapeDtypeStruct((Bp, Hp), jnp.bfloat16),
                   jax.ShapeDtypeStruct((n_bt, 8, Hp), jnp.float32)),
        grid_spec=pltpu.PrefetchScalarGridSpec(
            num_scalar_prefetch=0,
            grid=(n_bt,),
            in_specs=[
                pl.BlockSpec((TB, Ip), lambda i: (i, 0)),        # x  (streamed)
                pl.BlockSpec((Ip, Hp), lambda i: (0, 0)),        # w1 (resident)
            ],
            out_specs=(
                pl.BlockSpec((TB, Hp), lambda i: (i, 0)),        # h cache
                pl.BlockSpec((1, 8, Hp), lambda i: (i, 0, 0)),   # partial stats
            ),
        ),
        compiler_params=pltpu.CompilerParams(
            dimension_semantics=("parallel",),
            vmem_limit_bytes=_vlimit(est1),
        ),
    )(x_p, w1_p)

    # Fold full-batch BatchNorm into one per-feature scale/shift (tiny f32 op).
    stats = jnp.sum(stats_p, axis=0)                     # (8, Hp)
    mean = stats[0:1] / B
    var = jnp.maximum(stats[1:2] / B - mean * mean, 0.0)
    scale = gamma_p * jax.lax.rsqrt(var + BN_EPS)
    shift = beta_p - mean * scale

    # Pass 2: normalize + ReLU + fc2.  Fully parallel over batch tiles; every
    # output block is written exactly once (no spurious writeback).
    out_p = pl.pallas_call(
        _bn_relu_fc2_kernel,
        out_shape=jax.ShapeDtypeStruct((Bp, Op), out_dtype),
        grid_spec=pltpu.PrefetchScalarGridSpec(
            num_scalar_prefetch=0,
            grid=(n_bt,),
            in_specs=[
                pl.BlockSpec((TB, Hp), lambda i: (i, 0)),        # h  (streamed)
                pl.BlockSpec((1, Hp), lambda i: (0, 0)),         # folded scale
                pl.BlockSpec((1, Hp), lambda i: (0, 0)),         # folded shift
                pl.BlockSpec((Hp, Op), lambda i: (0, 0)),        # w2 (resident)
                pl.BlockSpec((1, Op), lambda i: (0, 0)),         # b2
            ],
            out_specs=pl.BlockSpec((TB, Op), lambda i: (i, 0)),
        ),
        compiler_params=pltpu.CompilerParams(
            dimension_semantics=("parallel",),
            vmem_limit_bytes=_vlimit(est2),
        ),
    )(h_p, scale, shift, w2_p, b2_p)

    return out_p[:B, :Out]


def init_params(key, input_dim, hidden_dim, output_dim):
    """Deterministic init mimicking PyTorch defaults (U(-1/sqrt(fan_in), +))."""
    k1, k2, k3, k4 = jax.random.split(key, 4)
    bound1 = 1.0 / jnp.sqrt(input_dim)
    bound2 = 1.0 / jnp.sqrt(hidden_dim)
    # Linear weights stored transposed: (in, out).
    w1 = jax.random.uniform(k1, (input_dim, hidden_dim), jnp.float32, -bound1, bound1)
    b1 = jax.random.uniform(k2, (1, hidden_dim), jnp.float32, -bound1, bound1)
    w2 = jax.random.uniform(k3, (hidden_dim, output_dim), jnp.float32, -bound2, bound2)
    b2 = jax.random.uniform(k4, (1, output_dim), jnp.float32, -bound2, bound2)
    gamma = jnp.ones((1, hidden_dim), jnp.float32)
    beta = jnp.zeros((1, hidden_dim), jnp.float32)
    return w1, b1, gamma, beta, w2, b2


def reference_forward(x, w1, b1, gamma, beta, w2, b2):
    """Pure-f32 reference matching the PyTorch module (training-mode BN)."""
    h = x @ w1 + b1
    mean = jnp.mean(h, axis=0, keepdims=True)
    var = jnp.mean((h - mean) ** 2, axis=0, keepdims=True)
    hn = (h - mean) * jax.lax.rsqrt(var + BN_EPS) * gamma + beta
    a = jnp.maximum(hn, 0.0)
    return a @ w2 + b2


if __name__ == "__main__":
    # Small shapes consistent with Predictor(input_dim, hidden_dim, output_dim).
    # TODO(synk): training-mode BatchNorm running_mean/running_var buffer
    # updates are not emitted; only the forward output is produced.
    batch, input_dim, hidden_dim, output_dim = 8, 32, 16, 32

    key = jax.random.PRNGKey(0)
    kx, kp = jax.random.split(key)
    x = jax.random.normal(kx, (batch, input_dim), jnp.float32)
    params = init_params(kp, input_dim, hidden_dim, output_dim)

    out = jax.block_until_ready(predictor_forward(x, *params))
    ref = reference_forward(x, *params)

    assert out.shape == (batch, output_dim)
    # Kernel uses bf16 MXU operands and a bf16 h cache (f32 accumulation, f32
    # BatchNorm math), so compare with bf16-level tolerance.
    assert jnp.allclose(out, ref, atol=3e-2, rtol=3e-2), "mismatch vs reference"

    print("KERNEL_OK")
</pallas_src>

<mosaic_0001>
module attributes {stable_mosaic.version = 11 : i64} {
  func.func @_fc1_stats_kernel(%arg0: i32, %arg1: memref<16x128xbf16, #tpu.memory_space<vmem>>, %arg2: memref<128x128xbf16, #tpu.memory_space<vmem>>, %arg3: memref<16x128xbf16, #tpu.memory_space<vmem>>, %arg4: memref<1x8x128xf32, #tpu.memory_space<vmem>>) attributes {dimension_semantics = [#tpu.dimension_semantics<parallel>], iteration_bounds = array<i64: 1>, scalar_prefetch = 0 : i64, scratch_operands = 0 : i64, tpu.core_type = #tpu.core_type<tc>, window_params = [{transform_indices = @transform_0, window_bounds = array<i64: 16, 128>}, {pipeline_mode = #tpu.pipeline_mode<synchronous>, transform_indices = @transform_1, window_bounds = array<i64: 128, 128>}, {transform_indices = @transform_2, window_bounds = array<i64: 16, 128>}, {transform_indices = @transform_3, window_bounds = array<i64: 1, 8, 128>}]} {
    %c0 = arith.constant 0 : index
    %c0_0 = arith.constant 0 : index
    %0 = vector.load %arg1[%c0, %c0_0] : memref<16x128xbf16, #tpu.memory_space<vmem>>, vector<16x128xbf16>
    %c0_1 = arith.constant 0 : index
    %c0_2 = arith.constant 0 : index
    %1 = vector.load %arg2[%c0_1, %c0_2] : memref<128x128xbf16, #tpu.memory_space<vmem>>, vector<128x128xbf16>
    %cst = arith.constant dense<0.000000e+00> : vector<16x128xf32>
    %2 = tpu.matmul %0, %1, %cst {dimension_numbers = #tpu.dot_dimension_numbers<[1], [0], [0], [1], [0, 0, 1, 1], [], []>} : vector<16x128xbf16>, vector<128x128xbf16>, vector<16x128xf32> -> vector<16x128xf32>
    %3 = arith.truncf %2 : vector<16x128xf32> to vector<16x128xbf16>
    %c0_3 = arith.constant 0 : index
    %c0_4 = arith.constant 0 : index
    %4 = vector.load %arg3[%c0_3, %c0_4] : memref<16x128xbf16, #tpu.memory_space<vmem>>, vector<16x128xbf16>
    tpu.vector_store %arg3[%c0_3, %c0_4], %3 {strides = array<i32>} : memref<16x128xbf16, #tpu.memory_space<vmem>>, vector<16x128xbf16>,
    %cst_5 = arith.constant dense<0.000000e+00> : vector<128xf32>
    %5 = vector.multi_reduction <add>, %2, %cst_5 [0] : vector<16x128xf32> to vector<128xf32>
    %6 = vector.shape_cast %5 : vector<128xf32> to vector<1x128xf32>
    %7 = arith.mulf %2, %2 : vector<16x128xf32>
    %cst_6 = arith.constant dense<0.000000e+00> : vector<128xf32>
    %8 = vector.multi_reduction <add>, %7, %cst_6 [0] : vector<16x128xf32> to vector<128xf32>
    %9 = vector.shape_cast %8 : vector<128xf32> to vector<1x128xf32>
    %cst_7 = arith.constant 0.000000e+00 : f32
    %10 = vector.broadcast %cst_7 : f32 to vector<6x128xf32>
    %11 = tpu.concatenate %6, %9, %10 in 0 : vector<1x128xf32>, vector<1x128xf32>, vector<6x128xf32> -> vector<8x128xf32>
    %c0_8 = arith.constant 0 : index
    %c0_9 = arith.constant 0 : index
    %c0_10 = arith.constant 0 : index
    %12 = vector.load %arg4[%c0_8, %c0_9, %c0_10] : memref<1x8x128xf32, #tpu.memory_space<vmem>>, vector<1x8x128xf32>
    %13 = vector.shape_cast %12 : vector<1x8x128xf32> to vector<8x128xf32>
    %14 = vector.shape_cast %11 : vector<8x128xf32> to vector<1x8x128xf32>
    tpu.vector_store %arg4[%c0_8, %c0_9, %c0_10], %14 {strides = array<i32>} : memref<1x8x128xf32, #tpu.memory_space<vmem>>, vector<1x8x128xf32>,
    return
  }
  func.func @transform_0(%arg0: i32) -> (i32, i32) {
    %c0_i32 = arith.constant 0 : i32
    %c0_i32_0 = arith.constant 0 : i32
    return %arg0, %c0_i32 : i32, i32
  }
  func.func @transform_1(%arg0: i32) -> (i32, i32) {
    %c0_i32 = arith.constant 0 : i32
    %c0_i32_0 = arith.constant 0 : i32
    %c0_i32_1 = arith.constant 0 : i32
    return %c0_i32, %c0_i32_0 : i32, i32
  }
  func.func @transform_2(%arg0: i32) -> (i32, i32) {
    %c0_i32 = arith.constant 0 : i32
    %c0_i32_0 = arith.constant 0 : i32
    return %arg0, %c0_i32 : i32, i32
  }
  func.func @transform_3(%arg0: i32) -> (i32, i32, i32) {
    %c0_i32 = arith.constant 0 : i32
    %c0_i32_0 = arith.constant 0 : i32
    %c0_i32_1 = arith.constant 0 : i32
    return %arg0, %c0_i32, %c0_i32_0 : i32, i32, i32
  }
}

</mosaic_0001>

<llo_original>
// kernel: tpu_custom_call.1
$region0: #{tpu_custom_call.1}
  #allocation0 [shape = 'u32[]', space=smem, size = 0x4, offset = 0x4, fixed_abs, tag = 'smem constant byte address 0x4 - core index']
  #allocation1 [shape = 'u32[144,128]{1,0:T(1,128)}', space=vmem, size = 0x12000, scoped, tag = 'internal scratch']
  %s0 = inlined_call_operand.hbm [shape: bf16[16,128], index: 0, kind: input, shape index: {}]
  %s1 = inlined_call_operand.hbm [shape: bf16[128,128], index: 1, kind: input, shape index: {}]
  %s2 = inlined_call_operand.hbm [shape: bf16[16,128], index: 2, kind: output, shape index: {0}]
  %s3 = inlined_call_operand.hbm [shape: f32[1,8,128], index: 3, kind: output, shape index: {1}]
  %4 = xla_tuple %s2, %s3
  %s5 = sld [smem:[#allocation0]]
  $region34: #{tpu_custom_call.1} parent=0
    _
  %s7 = ssub.s32 1, %s5
  %s8 = scalar_select 0, %s7, %s5
  $region1: #{tpu_custom_call.1} parent=0
    #allocation2 [shape = 'u8[4096]{0}', space=vmem, size = 0x1000, scoped, tag = 'input window, operand 0, single buffered']
    #allocation3 [shape = 's32[1]{0}', space=sflag, size = 0x4, scoped, tag = 'scoped memory for tpu_custom_call.1']
    #allocation4 [shape = 's32[1]{0}', space=sflag, size = 0x4, scoped, tag = 'scoped memory for tpu_custom_call.1']
    #allocation5 [shape = 'u8[32768]{0}', space=vmem, size = 0x8000, scoped, tag = 'input window, operand 1, single buffered']
    #allocation6 [shape = 's32[1]{0}', space=sflag, size = 0x4, scoped, tag = 'scoped memory for tpu_custom_call.1']
    #allocation7 [shape = 'u8[4096]{0}', space=vmem, size = 0x1000, scoped, tag = 'output window, operand 0, single buffered']
    #allocation8 [shape = 'u8[4096]{0}', space=vmem, size = 0x1000, scoped, tag = 'output window, operand 1, single buffered']
    #allocation9 [shape = 's32[1]{0}', space=sflag, size = 0x4, scoped, tag = 'scoped memory for tpu_custom_call.1']
    %9 = vsyncpa [#allocation3], 0
    %10 = vsyncpa [#allocation6], 0
    %11 = vsyncpa [#allocation4], 0
    %12 = vsyncpa [#allocation9], 0
    // Predicated region
    $region2: #{tpu_custom_call.1} parent=1 // pred_check
      _
    $region3: #{tpu_custom_call.1} parent=1 // pred_check_branch
      %14 = sbr.rel (0) target = $region5
    $region4: #{tpu_custom_call.1} parent=1 // pred_region
      %s16 = ssub.s32 128, 128
      %17 = vsyncadd [#allocation3], %s16
      %s18 = sshll.u32 [#allocation2], 4
      %s19 = int_to_ptr.vmem [resolvable:$true] %s18
      %24 = dma.hbm_to_vmem [thread:$0]  %s0, 128, %s19, [#allocation3], 64, 64, 4
    $region5: #{tpu_custom_call.1} parent=1 // pred_fallthru
      _
    // Predicated region
    $region6: #{tpu_custom_call.1} parent=1 // pred_check
      _
    $region7: #{tpu_custom_call.1} parent=1 // pred_check_branch
      %26 = sbr.rel (0) target = $region9
    $region8: #{tpu_custom_call.1} parent=1 // pred_region
      %s28 = ssub.s32 1024, 1024
      %29 = vsyncadd [#allocation6], %s28
      %s30 = sshll.u32 [#allocation5], 4
      %s31 = int_to_ptr.vmem [resolvable:$true] %s30
      %36 = dma.hbm_to_vmem [thread:$0]  %s1, 1024, %s31, [#allocation6], 64, 64, 4
    $region9: #{tpu_custom_call.1} parent=1 // pred_fallthru
      _
    // Predicated region
    $region10: #{tpu_custom_call.1} parent=1 // pred_check
      _
    $region11: #{tpu_custom_call.1} parent=1 // pred_check_branch
      %38 = sbr.rel (0) target = $region13
    $region12: #{tpu_custom_call.1} parent=1 // pred_region
      %39 = dma.done [#allocation3], 128
    $region13: #{tpu_custom_call.1} parent=1 // pred_fallthru
      _
    // Predicated region
    $region14: #{tpu_custom_call.1} parent=1 // pred_check
      _
    $region15: #{tpu_custom_call.1} parent=1 // pred_check_branch
      %41 = sbr.rel (0) target = $region17
    $region16: #{tpu_custom_call.1} parent=1 // pred_region
      %42 = dma.done [#allocation6], 1024
    $region17: #{tpu_custom_call.1} parent=1 // pred_fallthru
      _
    %v44 = vld [vmem:[#allocation2] sm:$0xf]
    %v45 = vld [vmem:[#allocation2 + $0x4] sm:$0xf]
    %v46 = vld [vmem:[#allocation5] sm:$0xf]
    %v47 = vld [vmem:[#allocation5 + $0x4] sm:$0xf]
    %v48 = vld [vmem:[#allocation5 + $0x8] sm:$0xf]
    %v49 = vld [vmem:[#allocation5 + $0xc] sm:$0xf]
    %v50 = vld [vmem:[#allocation5 + $0x10] sm:$0xf]
    %v51 = vld [vmem:[#allocation5 + $0x14] sm:$0xf]
    %v52 = vld [vmem:[#allocation5 + $0x18] sm:$0xf]
    %v53 = vld [vmem:[#allocation5 + $0x1c] sm:$0xf]
    %v54 = vld [vmem:[#allocation5 + $0x20] sm:$0xf]
    %v55 = vld [vmem:[#allocation5 + $0x24] sm:$0xf]
    %v56 = vld [vmem:[#allocation5 + $0x28] sm:$0xf]
    %v57 = vld [vmem:[#allocation5 + $0x2c] sm:$0xf]
    %v58 = vld [vmem:[#allocation5 + $0x30] sm:$0xf]
    %v59 = vld [vmem:[#allocation5 + $0x34] sm:$0xf]
    %v60 = vld [vmem:[#allocation5 + $0x38] sm:$0xf]
    %v61 = vld [vmem:[#allocation5 + $0x3c] sm:$0xf]
    %v64 = vunpack.c.l.b16 %v44
    %v65 = vunpack.c.l.b16 %v45
    %v66 = vpack.c.b16 %v65, %v64
    %v84 = vunpack.c.l.b16 %v46
    %v85 = vunpack.c.l.b16 %v47
    %v86 = vunpack.c.l.b16 %v48
    %v87 = vunpack.c.l.b16 %v49
    %v88 = vunpack.c.l.b16 %v50
    %v89 = vunpack.c.l.b16 %v51
    %v90 = vunpack.c.l.b16 %v52
    %v91 = vunpack.c.l.b16 %v53
    %v92 = vunpack.c.l.b16 %v54
    %v93 = vunpack.c.l.b16 %v55
    %v94 = vunpack.c.l.b16 %v56
    %v95 = vunpack.c.l.b16 %v57
    %v96 = vunpack.c.l.b16 %v58
    %v97 = vunpack.c.l.b16 %v59
    %v98 = vunpack.c.l.b16 %v60
    %v99 = vunpack.c.l.b16 %v61
    %v100 = vpack.c.b16 %v85, %v84
    %v101 = vpack.c.b16 %v87, %v86
    %v102 = vpack.c.b16 %v89, %v88
    %v103 = vpack.c.b16 %v91, %v90
    %v104 = vpack.c.b16 %v93, %v92
    %v105 = vpack.c.b16 %v95, %v94
    %v106 = vpack.c.b16 %v97, %v96
    %v107 = vpack.c.b16 %v99, %v98
    %116 = vmatprep.subr.bf16.mxu0 0
    %117 = vmatpush1.bf16.msra.mxu0 %v100
    %118 = vmatprep.subr.bf16.mxu0 0
    %119 = vmatpush1.bf16.msra.mxu0 %v101
    %120 = vmatprep.subr.bf16.mxu0 0
    %121 = vmatpush1.bf16.msra.mxu0 %v102
    %122 = vmatprep.subr.bf16.mxu0 0
    %123 = vmatpush1.bf16.msra.mxu0 %v103
    %124 = vmatprep.subr.bf16.mxu0 0
    %125 = vmatpush1.bf16.msra.mxu0 %v104
    %126 = vmatprep.subr.bf16.mxu0 0
    %127 = vmatpush1.bf16.msra.mxu0 %v105
    %128 = vmatprep.subr.bf16.mxu0 0
    %129 = vmatpush1.bf16.msra.mxu0 %v106
    %130 = vmatprep.subr.bf16.mxu0 0
    %131 = vmatpush1.bf16.msra.mxu0 %v107
    %132 = vmatprep.subr.bf16.mxu0 0
    %133 = vmatpush1.bf16.msra.mxu0 0
    %134 = vmatprep.subr.bf16.mxu0 0
    %135 = vmatpush1.bf16.msra.mxu0 0
    %136 = vmatprep.subr.bf16.mxu0 0
    %137 = vmatpush1.bf16.msra.mxu0 0
    %138 = vmatprep.subr.bf16.mxu0 0
    %139 = vmatpush1.bf16.msra.mxu0 0
    %140 = vmatprep.subr.bf16.mxu0 0
    %141 = vmatpush1.bf16.msra.mxu0 0
    %142 = vmatprep.subr.bf16.mxu0 0
    %143 = vmatpush1.bf16.msra.mxu0 0
    %144 = vmatprep.subr.bf16.mxu0 0
    %145 = vmatpush1.bf16.msra.mxu0 0
    %146 = vmatprep.subr.bf16.mxu0 0
    %147 = vmatpush1.bf16.msra.mxu0 0
    %148 = vmatprep.mubr.bf16.mxu0 0
    %149 = vmatmul.mubr.bf16.gmra.mrb[0].mxu0 %v66
    %v150 = vpop.f32.mrb[0].mxu0
    %v151 = vadd.f32 0.0, %v150
    %v152 = vpop.f32.mrb[0].mxu0
    %v153 = vpop.f32.mrb[0].mxu0
    %v154 = vadd.f32 0.0, %v153
    %v155 = vpop.f32.mrb[0].mxu0
    %156 = vdwg.mxu0
    %v157 = vpack.c.bf16 %v154, %v151
    %v159 = vunpack.c.l.b16 %v157
    %v160 = vunpack.c.h.b16 %v157
    %v161 = vpack.c.b16 %v159, %v159
    %v162 = vpack.c.b16 %v160, %v160
    %165 = vst [vmem:[#allocation7] sm:$0xf] %v161
    %166 = vst [vmem:[#allocation7 + $0x4] sm:$0xf] %v162
    %v167 = vadd.f32 %v151, %v154
    %v168 = vrot.slane %v167, 4
    %v169 = vadd.f32 %v167, %v168
    %v170 = vrot.slane %v169, 2
    %v171 = vadd.f32 %v169, %v170
    %v172 = vrot.slane %v171, 1
    %v173 = vadd.f32 %v171, %v172
    %v174 = vmul.f32 %v151, %v151
    %v175 = vmul.f32 %v154, %v154
    %v176 = vadd.f32 %v174, %v175
    %v177 = vrot.slane %v176, 4
    %v178 = vadd.f32 %v176, %v177
    %v179 = vrot.slane %v178, 2
    %v180 = vadd.f32 %v178, %v179
    %v181 = vrot.slane %v180, 1
    %v182 = vadd.f32 %v180, %v181
    %vm183 = vcmask 1040384
    %v184 = vsel %vm183, %v173, %v182
    %vm185 = vcmask 1041408
    %v186 = vsel %vm185, %v184, 0.0
    %187 = vst [vmem:[#allocation8] sm:$0xff] %v186
    // Predicated region
    $region18: #{tpu_custom_call.1} parent=1 // pred_check
      _
    $region19: #{tpu_custom_call.1} parent=1 // pred_check_branch
      %189 = sbr.rel (0) target = $region21
    $region20: #{tpu_custom_call.1} parent=1 // pred_region
      %s191 = ssub.s32 128, 128
      %192 = vsyncadd [#allocation4], %s191
      %s193 = sshll.u32 [#allocation7], 4
      %s194 = int_to_ptr.vmem [resolvable:$true] %s193
      %199 = dma.vmem_to_hbm [thread:$0]  %s194, 128, %s2, [#allocation4], 64, 64, 4
    $region21: #{tpu_custom_call.1} parent=1 // pred_fallthru
      _
    // Predicated region
    $region22: #{tpu_custom_call.1} parent=1 // pred_check
      _
    $region23: #{tpu_custom_call.1} parent=1 // pred_check_branch
      %201 = sbr.rel (0) target = $region25
    $region24: #{tpu_custom_call.1} parent=1 // pred_region
      %s203 = ssub.s32 128, 128
      %204 = vsyncadd [#allocation9], %s203
      %s206 = sshll.u32 [#allocation8], 4
      %s207 = int_to_ptr.vmem [resolvable:$true] %s206
      %209 = dma.vmem_to_hbm [thread:$0]  %s207, 128, %s3, [#allocation9]
    $region25: #{tpu_custom_call.1} parent=1 // pred_fallthru
      _
    // Predicated region
    $region26: #{tpu_custom_call.1} parent=1 // pred_check
      _
    $region27: #{tpu_custom_call.1} parent=1 // pred_check_branch
      %211 = sbr.rel (0) target = $region29
    $region28: #{tpu_custom_call.1} parent=1 // pred_region
      %212 = dma.done [#allocation4], 128
    $region29: #{tpu_custom_call.1} parent=1 // pred_fallthru
      _
    // Predicated region
    $region30: #{tpu_custom_call.1} parent=1 // pred_check
      _
    $region31: #{tpu_custom_call.1} parent=1 // pred_check_branch
      %214 = sbr.rel (0) target = $region33
    $region32: #{tpu_custom_call.1} parent=1 // pred_region
      %215 = dma.done [#allocation9], 128
    $region33: #{tpu_custom_call.1} parent=1 // pred_fallthru
      _
    %216 = vsyncpa [#allocation3], 1
    %217 = vsyncpa [#allocation6], 1
    %218 = vsyncpa [#allocation4], 1
    %219 = vsyncpa [#allocation9], 1

</llo_original>
